<compile_context>
chip_gen: v6e
topology: v6e:2x2x1
jax: 0.10.0
libtpu: 0.0.40
codegen_flags: <defaults>
</compile_context>

<pallas_src>
import jax
import jax.numpy as jnp
from jax.experimental import pallas as pl
from jax.experimental.pallas import tpu as pltpu


def _round_up(x, m):
    return (x + m - 1) // m * m


def mlp_kernel(x_ref, wh_ref, bh_ref, wc_ref, bc_ref, o_ref):
    """Fused MLP tower + classifier + ReLU for one tile of tokens.

    x_ref  : (TM, H)          token tile, f32
    wh_ref : (L, H, H)        hidden-layer weights (layer, in, out), bf16
    bh_ref : (L, 1, H)        hidden-layer biases, f32
    wc_ref : (H, C_pad)       classifier weight (in, out), bf16, zero-padded cols
    bc_ref : (1, C_pad)       classifier bias, f32, zero-padded
    o_ref  : (TM, C_pad)      relu(logits), f32 (lane-dense, padded cols sliced off
                              in the wrapper)
    """
    h = x_ref[...].astype(jnp.float32)
    num_layers = wh_ref.shape[0]

    # Statically unrolled layer loop (L is small & known at trace time).
    # bf16 x bf16 MXU matmul with f32 accumulation; bias add + tanh in f32.
    for l in range(num_layers):
        y = jnp.dot(h.astype(jnp.bfloat16), wh_ref[l],
                    preferred_element_type=jnp.float32) + bh_ref[l]
        h = jnp.tanh(y)

    logits = jnp.dot(h.astype(jnp.bfloat16), wc_ref[...],
                     preferred_element_type=jnp.float32) + bc_ref[...]
    o_ref[...] = jnp.maximum(logits, 0.0).astype(o_ref.dtype)


def transformer_mlp_forward(hidden_states, wh, bh, wc, bc, *, tm=256):
    """hidden_states: (B, S, H); returns relu(classifier(MLP(x))) of shape (B, S, C)."""
    B, S, H = hidden_states.shape
    L = wh.shape[0]
    C = wc.shape[1]
    tokens = B * S

    # Lane-dense output width (multiple of 128 lanes).
    C_pad = _round_up(max(C, 1), 128)

    # Token tile: as large as practical; clamp for tiny inputs, pad to a multiple.
    tm = min(tm, _round_up(tokens, 8))
    tokens_pad = _round_up(tokens, tm)

    # --- wrapper-side layout / dtype prep (cheap, done once in XLA) ---
    x2d = hidden_states.reshape(tokens, H).astype(jnp.float32)
    if tokens_pad != tokens:
        x2d = jnp.pad(x2d, ((0, tokens_pad - tokens), (0, 0)))

    wh_bf = wh.astype(jnp.bfloat16)                                   # (L, H, H)
    bh3d = bh.reshape(L, 1, H).astype(jnp.float32)                    # (L, 1, H)
    wc_p = jnp.pad(wc, ((0, 0), (0, C_pad - C))).astype(jnp.bfloat16)  # (H, C_pad)
    bc2d = jnp.pad(bc.reshape(1, C), ((0, 0), (0, C_pad - C))).astype(jnp.float32)

    # --- VMEM budget (double-buffered blocks) + cost hint ---
    est_vmem = 2 * (
        tm * H * 4            # x tile (f32)
        + tm * C_pad * 4      # out tile (f32)
        + L * H * H * 2       # hidden weights (bf16)
        + L * H * 4           # hidden biases (f32)
        + H * C_pad * 2       # classifier weight (bf16)
        + C_pad * 4           # classifier bias (f32)
    )
    vmem_limit_bytes = int(min(max(est_vmem + (4 << 20), 16 << 20), 48 << 20))

    cost = pl.CostEstimate(
        flops=2 * tokens_pad * H * (L * H + C_pad),
        transcendentals=tokens_pad * H * L,
        bytes_accessed=(tokens_pad * H * 4 + L * H * H * 2 + L * H * 4
                        + H * C_pad * 2 + C_pad * 4 + tokens_pad * C_pad * 4),
    )

    grid = (tokens_pad // tm,)
    out2d = pl.pallas_call(
        mlp_kernel,
        out_shape=jax.ShapeDtypeStruct((tokens_pad, C_pad), jnp.float32),
        grid_spec=pltpu.PrefetchScalarGridSpec(
            num_scalar_prefetch=0,
            grid=grid,
            in_specs=[
                pl.BlockSpec((tm, H), lambda i: (i, 0)),        # x tile
                pl.BlockSpec((L, H, H), lambda i: (0, 0, 0)),   # hidden weights (all layers)
                pl.BlockSpec((L, 1, H), lambda i: (0, 0, 0)),   # hidden biases
                pl.BlockSpec((H, C_pad), lambda i: (0, 0)),     # classifier weight (padded)
                pl.BlockSpec((1, C_pad), lambda i: (0, 0)),     # classifier bias (padded)
            ],
            out_specs=pl.BlockSpec((tm, C_pad), lambda i: (i, 0)),
        ),
        compiler_params=pltpu.CompilerParams(
            dimension_semantics=("parallel",),
            vmem_limit_bytes=vmem_limit_bytes,
        ),
        cost_estimate=cost,
    )(x2d, wh_bf, bh3d, wc_p, bc2d)

    return out2d[:tokens, :C].reshape(B, S, C)


def reference_forward(hidden_states, wh, bh, wc, bc):
    """Plain-JAX f32 reference of the same computation (eval-mode dropout == identity)."""
    x = hidden_states.astype(jnp.float32)
    for l in range(wh.shape[0]):
        x = jnp.tanh(x @ wh[l] + bh[l])
    logits = x @ wc + bc
    return jnp.maximum(logits, 0.0)


if __name__ == "__main__":
    # Small shapes consistent with the module (hidden_size, num_hidden_layers,
    # num_labels scaled down): batch=2, seq=8, hidden=128, layers=3, labels=8.
    B, S, H, L, C = 2, 8, 128, 3, 8

    key = jax.random.PRNGKey(0)
    k_x, k_wh, k_bh, k_wc, k_bc = jax.random.split(key, 5)

    # Deterministic synthetic "parameters" (the PyTorch module would have
    # torch.nn.Linear weights here).
    hidden_states = jax.random.normal(k_x, (B, S, H), dtype=jnp.float32)
    wh = 0.05 * jax.random.normal(k_wh, (L, H, H), dtype=jnp.float32)   # (layer, in, out)
    bh = 0.05 * jax.random.normal(k_bh, (L, H), dtype=jnp.float32)
    wc = 0.05 * jax.random.normal(k_wc, (H, C), dtype=jnp.float32)      # (in, out)
    bc = 0.05 * jax.random.normal(k_bc, (C,), dtype=jnp.float32)

    out = transformer_mlp_forward(hidden_states, wh, bh, wc, bc, tm=256)
    out = jax.block_until_ready(out)

    ref = reference_forward(hidden_states, wh, bh, wc, bc)
    assert out.shape == (B, S, C), out.shape
    # Kernel uses bf16 weights/activations on the MXU (f32 accumulation), so the
    # tolerance vs. the pure-f32 reference is relaxed accordingly.
    assert jnp.allclose(out, ref, atol=2e-2, rtol=2e-2), "mismatch vs reference"

    print("KERNEL_OK")
</pallas_src>

<mosaic_0001>
module attributes {stable_mosaic.version = 11 : i64} {
  func.func @mlp_kernel(%arg0: i32, %arg1: memref<16x128xf32, #tpu.memory_space<vmem>>, %arg2: memref<3x128x128xbf16, #tpu.memory_space<vmem>>, %arg3: memref<3x1x128xf32, #tpu.memory_space<vmem>>, %arg4: memref<128x128xbf16, #tpu.memory_space<vmem>>, %arg5: memref<1x128xf32, #tpu.memory_space<vmem>>, %arg6: memref<16x128xf32, #tpu.memory_space<vmem>>) attributes {dimension_semantics = [#tpu.dimension_semantics<parallel>], iteration_bounds = array<i64: 1>, scalar_prefetch = 0 : i64, scratch_operands = 0 : i64, tpu.core_type = #tpu.core_type<tc>, window_params = [{transform_indices = @transform_0, window_bounds = array<i64: 16, 128>}, {pipeline_mode = #tpu.pipeline_mode<synchronous>, transform_indices = @transform_1, window_bounds = array<i64: 3, 128, 128>}, {pipeline_mode = #tpu.pipeline_mode<synchronous>, transform_indices = @transform_2, window_bounds = array<i64: 3, 1, 128>}, {pipeline_mode = #tpu.pipeline_mode<synchronous>, transform_indices = @transform_3, window_bounds = array<i64: 128, 128>}, {pipeline_mode = #tpu.pipeline_mode<synchronous>, transform_indices = @transform_4, window_bounds = array<i64: 1, 128>}, {transform_indices = @transform_5, window_bounds = array<i64: 16, 128>}]} {
    %c0 = arith.constant 0 : index
    %c0_0 = arith.constant 0 : index
    %0 = vector.load %arg1[%c0, %c0_0] : memref<16x128xf32, #tpu.memory_space<vmem>>, vector<16x128xf32>
    %1 = arith.truncf %0 : vector<16x128xf32> to vector<16x128xbf16>
    %c0_1 = arith.constant 0 : index
    %c0_2 = arith.constant 0 : index
    %c0_3 = arith.constant 0 : index
    %2 = vector.load %arg2[%c0_1, %c0_2, %c0_3] : memref<3x128x128xbf16, #tpu.memory_space<vmem>>, vector<1x128x128xbf16>
    %3 = vector.shape_cast %2 : vector<1x128x128xbf16> to vector<128x128xbf16>
    %cst = arith.constant dense<0.000000e+00> : vector<16x128xf32>
    %4 = tpu.matmul %1, %3, %cst {dimension_numbers = #tpu.dot_dimension_numbers<[1], [0], [0], [1], [0, 0, 1, 1], [], []>} : vector<16x128xbf16>, vector<128x128xbf16>, vector<16x128xf32> -> vector<16x128xf32>
    %c0_4 = arith.constant 0 : index
    %c0_5 = arith.constant 0 : index
    %c0_6 = arith.constant 0 : index
    %5 = vector.load %arg3[%c0_4, %c0_5, %c0_6] : memref<3x1x128xf32, #tpu.memory_space<vmem>>, vector<1x1x128xf32>
    %6 = vector.shape_cast %5 : vector<1x1x128xf32> to vector<1x128xf32>
    %7 = vector.broadcast %6 : vector<1x128xf32> to vector<16x128xf32>
    %8 = arith.addf %4, %7 : vector<16x128xf32>
    %9 = math.tanh %8 : vector<16x128xf32>
    %10 = arith.truncf %9 : vector<16x128xf32> to vector<16x128xbf16>
    %c1 = arith.constant 1 : index
    %c0_7 = arith.constant 0 : index
    %c0_8 = arith.constant 0 : index
    %11 = vector.load %arg2[%c1, %c0_7, %c0_8] : memref<3x128x128xbf16, #tpu.memory_space<vmem>>, vector<1x128x128xbf16>
    %12 = vector.shape_cast %11 : vector<1x128x128xbf16> to vector<128x128xbf16>
    %cst_9 = arith.constant dense<0.000000e+00> : vector<16x128xf32>
    %13 = tpu.matmul %10, %12, %cst_9 {dimension_numbers = #tpu.dot_dimension_numbers<[1], [0], [0], [1], [0, 0, 1, 1], [], []>} : vector<16x128xbf16>, vector<128x128xbf16>, vector<16x128xf32> -> vector<16x128xf32>
    %c1_10 = arith.constant 1 : index
    %c0_11 = arith.constant 0 : index
    %c0_12 = arith.constant 0 : index
    %14 = vector.load %arg3[%c1_10, %c0_11, %c0_12] : memref<3x1x128xf32, #tpu.memory_space<vmem>>, vector<1x1x128xf32>
    %15 = vector.shape_cast %14 : vector<1x1x128xf32> to vector<1x128xf32>
    %16 = vector.broadcast %15 : vector<1x128xf32> to vector<16x128xf32>
    %17 = arith.addf %13, %16 : vector<16x128xf32>
    %18 = math.tanh %17 : vector<16x128xf32>
    %19 = arith.truncf %18 : vector<16x128xf32> to vector<16x128xbf16>
    %c2 = arith.constant 2 : index
    %c0_13 = arith.constant 0 : index
    %c0_14 = arith.constant 0 : index
    %20 = vector.load %arg2[%c2, %c0_13, %c0_14] : memref<3x128x128xbf16, #tpu.memory_space<vmem>>, vector<1x128x128xbf16>
    %21 = vector.shape_cast %20 : vector<1x128x128xbf16> to vector<128x128xbf16>
    %cst_15 = arith.constant dense<0.000000e+00> : vector<16x128xf32>
    %22 = tpu.matmul %19, %21, %cst_15 {dimension_numbers = #tpu.dot_dimension_numbers<[1], [0], [0], [1], [0, 0, 1, 1], [], []>} : vector<16x128xbf16>, vector<128x128xbf16>, vector<16x128xf32> -> vector<16x128xf32>
    %c2_16 = arith.constant 2 : index
    %c0_17 = arith.constant 0 : index
    %c0_18 = arith.constant 0 : index
    %23 = vector.load %arg3[%c2_16, %c0_17, %c0_18] : memref<3x1x128xf32, #tpu.memory_space<vmem>>, vector<1x1x128xf32>
    %24 = vector.shape_cast %23 : vector<1x1x128xf32> to vector<1x128xf32>
    %25 = vector.broadcast %24 : vector<1x128xf32> to vector<16x128xf32>
    %26 = arith.addf %22, %25 : vector<16x128xf32>
    %27 = math.tanh %26 : vector<16x128xf32>
    %28 = arith.truncf %27 : vector<16x128xf32> to vector<16x128xbf16>
    %c0_19 = arith.constant 0 : index
    %c0_20 = arith.constant 0 : index
    %29 = vector.load %arg4[%c0_19, %c0_20] : memref<128x128xbf16, #tpu.memory_space<vmem>>, vector<128x128xbf16>
    %cst_21 = arith.constant dense<0.000000e+00> : vector<16x128xf32>
    %30 = tpu.matmul %28, %29, %cst_21 {dimension_numbers = #tpu.dot_dimension_numbers<[1], [0], [0], [1], [0, 0, 1, 1], [], []>} : vector<16x128xbf16>, vector<128x128xbf16>, vector<16x128xf32> -> vector<16x128xf32>
    %c0_22 = arith.constant 0 : index
    %c0_23 = arith.constant 0 : index
    %31 = vector.load %arg5[%c0_22, %c0_23] : memref<1x128xf32, #tpu.memory_space<vmem>>, vector<1x128xf32>
    %32 = vector.broadcast %31 : vector<1x128xf32> to vector<16x128xf32>
    %33 = arith.addf %30, %32 : vector<16x128xf32>
    %cst_24 = arith.constant 0.000000e+00 : f32
    %34 = vector.broadcast %cst_24 : f32 to vector<16x128xf32>
    %35 = arith.maximumf %33, %34 : vector<16x128xf32>
    %c0_25 = arith.constant 0 : index
    %c0_26 = arith.constant 0 : index
    %36 = vector.load %arg6[%c0_25, %c0_26] : memref<16x128xf32, #tpu.memory_space<vmem>>, vector<16x128xf32>
    tpu.vector_store %arg6[%c0_25, %c0_26], %35 {strides = array<i32>} : memref<16x128xf32, #tpu.memory_space<vmem>>, vector<16x128xf32>,
    return
  }
  func.func @transform_0(%arg0: i32) -> (i32, i32) {
    %c0_i32 = arith.constant 0 : i32
    %c0_i32_0 = arith.constant 0 : i32
    return %arg0, %c0_i32 : i32, i32
  }
  func.func @transform_1(%arg0: i32) -> (i32, i32, i32) {
    %c0_i32 = arith.constant 0 : i32
    %c0_i32_0 = arith.constant 0 : i32
    %c0_i32_1 = arith.constant 0 : i32
    %c0_i32_2 = arith.constant 0 : i32
    return %c0_i32, %c0_i32_0, %c0_i32_1 : i32, i32, i32
  }
  func.func @transform_2(%arg0: i32) -> (i32, i32, i32) {
    %c0_i32 = arith.constant 0 : i32
    %c0_i32_0 = arith.constant 0 : i32
    %c0_i32_1 = arith.constant 0 : i32
    %c0_i32_2 = arith.constant 0 : i32
    return %c0_i32, %c0_i32_0, %c0_i32_1 : i32, i32, i32
  }
  func.func @transform_3(%arg0: i32) -> (i32, i32) {
    %c0_i32 = arith.constant 0 : i32
    %c0_i32_0 = arith.constant 0 : i32
    %c0_i32_1 = arith.constant 0 : i32
    return %c0_i32, %c0_i32_0 : i32, i32
  }
  func.func @transform_4(%arg0: i32) -> (i32, i32) {
    %c0_i32 = arith.constant 0 : i32
    %c0_i32_0 = arith.constant 0 : i32
    %c0_i32_1 = arith.constant 0 : i32
    return %c0_i32, %c0_i32_0 : i32, i32
  }
  func.func @transform_5(%arg0: i32) -> (i32, i32) {
    %c0_i32 = arith.constant 0 : i32
    %c0_i32_0 = arith.constant 0 : i32
    return %arg0, %c0_i32 : i32, i32
  }
}

</mosaic_0001>

<llo_original>
// kernel: tpu_custom_call.1
$region0: #{tpu_custom_call.1}
  #allocation0 [shape = 'u32[]', space=smem, size = 0x4, offset = 0x4, fixed_abs, tag = 'smem constant byte address 0x4 - core index']
  #allocation1 [shape = 'u32[144,128]{1,0:T(1,128)}', space=vmem, size = 0x12000, scoped, tag = 'internal scratch']
  %s0 = inlined_call_operand.hbm [shape: f32[16,128], index: 0, kind: input, shape index: {}]
  %s1 = inlined_call_operand.hbm [shape: bf16[3,128,128], index: 1, kind: input, shape index: {}]
  %s2 = inlined_call_operand.vmem [shape: f32[3,1,128], index: 2, kind: input, shape index: {}]
  %s3 = inlined_call_operand.hbm [shape: bf16[128,128], index: 3, kind: input, shape index: {}]
  %s4 = inlined_call_operand.vmem [shape: f32[1,128], index: 4, kind: input, shape index: {}]
  %s5 = inlined_call_operand.hbm [shape: f32[16,128], index: 5, kind: output, shape index: {}]
  %s6 = sld [smem:[#allocation0]]
  $region42: #{tpu_custom_call.1} parent=0
    _
  %s8 = ssub.s32 1, %s6
  %s9 = scalar_select 0, %s8, %s6
  $region1: #{tpu_custom_call.1} parent=0
    #allocation2 [shape = 'u8[8192]{0}', space=vmem, size = 0x2000, scoped, tag = 'input window, operand 0, single buffered']
    #allocation3 [shape = 's32[1]{0}', space=sflag, size = 0x4, scoped, tag = 'scoped memory for tpu_custom_call.1']
    #allocation4 [shape = 's32[1]{0}', space=sflag, size = 0x4, scoped, tag = 'scoped memory for tpu_custom_call.1']
    #allocation5 [shape = 'u8[98304]{0}', space=vmem, size = 0x18000, scoped, tag = 'input window, operand 1, single buffered']
    #allocation6 [shape = 's32[1]{0}', space=sflag, size = 0x4, scoped, tag = 'scoped memory for tpu_custom_call.1']
    #allocation7 [shape = 'u8[32768]{0}', space=vmem, size = 0x8000, scoped, tag = 'input window, operand 3, single buffered']
    #allocation8 [shape = 'u8[8192]{0}', space=vmem, size = 0x2000, scoped, tag = 'output window, operand 0, single buffered']
    %10 = vsyncpa [#allocation3], 0
    %11 = vsyncpa [#allocation6], 0
    %12 = vsyncpa [#allocation4], 0
    // Predicated region
    $region2: #{tpu_custom_call.1} parent=1 // pred_check
      _
    $region3: #{tpu_custom_call.1} parent=1 // pred_check_branch
      %14 = sbr.rel (0) target = $region5
    $region4: #{tpu_custom_call.1} parent=1 // pred_region
      %s16 = ssub.s32 256, 256
      %17 = vsyncadd [#allocation3], %s16
      %s18 = sshll.u32 [#allocation2], 4
      %s19 = int_to_ptr.vmem [resolvable:$true] %s18
      %24 = dma.hbm_to_vmem [thread:$0]  %s0, 256, %s19, [#allocation3], 128, 128, 8
    $region5: #{tpu_custom_call.1} parent=1 // pred_fallthru
      _
    // Predicated region
    $region6: #{tpu_custom_call.1} parent=1 // pred_check
      _
    $region7: #{tpu_custom_call.1} parent=1 // pred_check_branch
      %26 = sbr.rel (0) target = $region9
    $region8: #{tpu_custom_call.1} parent=1 // pred_region
      %s28 = ssub.s32 3072, 3072
      %29 = vsyncadd [#allocation6], %s28
      %s30 = sshll.u32 [#allocation5], 4
      %s31 = int_to_ptr.vmem [resolvable:$true] %s30
      %36 = dma.hbm_to_vmem [thread:$0]  %s1, 3072, %s31, [#allocation6], 64, 64, 4
    $region9: #{tpu_custom_call.1} parent=1 // pred_fallthru
      _
    // Predicated region
    $region10: #{tpu_custom_call.1} parent=1 // pred_check
      _
    $region11: #{tpu_custom_call.1} parent=1 // pred_check_branch
      %38 = sbr.rel (0) target = $region13
    $region12: #{tpu_custom_call.1} parent=1 // pred_region
      _
    $region13: #{tpu_custom_call.1} parent=1 // pred_fallthru
      _
    // Predicated region
    $region14: #{tpu_custom_call.1} parent=1 // pred_check
      _
    $region15: #{tpu_custom_call.1} parent=1 // pred_check_branch
      %40 = sbr.rel (0) target = $region17
    $region16: #{tpu_custom_call.1} parent=1 // pred_region
      %s42 = ssub.s32 1024, 1024
      %43 = vsyncadd [#allocation6], %s42
      %s44 = sshll.u32 [#allocation7], 4
      %s45 = int_to_ptr.vmem [resolvable:$true] %s44
      %50 = dma.hbm_to_vmem [thread:$0]  %s3, 1024, %s45, [#allocation6], 64, 64, 4
    $region17: #{tpu_custom_call.1} parent=1 // pred_fallthru
      _
    // Predicated region
    $region18: #{tpu_custom_call.1} parent=1 // pred_check
      _
    $region19: #{tpu_custom_call.1} parent=1 // pred_check_branch
      %52 = sbr.rel (0) target = $region21
    $region20: #{tpu_custom_call.1} parent=1 // pred_region
      _
    $region21: #{tpu_custom_call.1} parent=1 // pred_fallthru
      _
    // Predicated region
    $region22: #{tpu_custom_call.1} parent=1 // pred_check
      _
    $region23: #{tpu_custom_call.1} parent=1 // pred_check_branch
      %54 = sbr.rel (0) target = $region25
    $region24: #{tpu_custom_call.1} parent=1 // pred_region
      %55 = dma.done [#allocation3], 256
    $region25: #{tpu_custom_call.1} parent=1 // pred_fallthru
      _
    // Predicated region
    $region26: #{tpu_custom_call.1} parent=1 // pred_check
      _
    $region27: #{tpu_custom_call.1} parent=1 // pred_check_branch
      %57 = sbr.rel (0) target = $region29
    $region28: #{tpu_custom_call.1} parent=1 // pred_region
      %58 = dma.done [#allocation6], 3072
    $region29: #{tpu_custom_call.1} parent=1 // pred_fallthru
      _
    // Predicated region
    $region30: #{tpu_custom_call.1} parent=1 // pred_check
      _
    $region31: #{tpu_custom_call.1} parent=1 // pred_check_branch
      %60 = sbr.rel (0) target = $region33
    $region32: #{tpu_custom_call.1} parent=1 // pred_region
      %61 = dma.done [#allocation6], 1024
    $region33: #{tpu_custom_call.1} parent=1 // pred_fallthru
      _
    %v63 = vld [vmem:[#allocation2] sm:$0xff]
    %v64 = vld [vmem:[#allocation2 + $0x8] sm:$0xff]
    %v65 = vpack.c.bf16 %v64, %v63
    %v66 = vld [vmem:[#allocation5] sm:$0xf]
    %v67 = vld [vmem:[#allocation5 + $0x4] sm:$0xf]
    %v68 = vld [vmem:[#allocation5 + $0x8] sm:$0xf]
    %v69 = vld [vmem:[#allocation5 + $0xc] sm:$0xf]
    %v70 = vld [vmem:[#allocation5 + $0x10] sm:$0xf]
    %v71 = vld [vmem:[#allocation5 + $0x14] sm:$0xf]
    %v72 = vld [vmem:[#allocation5 + $0x18] sm:$0xf]
    %v73 = vld [vmem:[#allocation5 + $0x1c] sm:$0xf]
    %v74 = vld [vmem:[#allocation5 + $0x20] sm:$0xf]
    %v75 = vld [vmem:[#allocation5 + $0x24] sm:$0xf]
    %v76 = vld [vmem:[#allocation5 + $0x28] sm:$0xf]
    %v77 = vld [vmem:[#allocation5 + $0x2c] sm:$0xf]
    %v78 = vld [vmem:[#allocation5 + $0x30] sm:$0xf]
    %v79 = vld [vmem:[#allocation5 + $0x34] sm:$0xf]
    %v80 = vld [vmem:[#allocation5 + $0x38] sm:$0xf]
    %v81 = vld [vmem:[#allocation5 + $0x3c] sm:$0xf]
    %v82 = vld [vmem:[%s2] sm:$0x1]
    %v84 = vlaneseq
    %v85 = vshrl.u32 %v84, 7
    %v86 = vsub.s32 0, %v85
    %v87 = vrot.slane %v82, %v86
    %v105 = vunpack.c.l.b16 %v66
    %v106 = vunpack.c.l.b16 %v67
    %v107 = vunpack.c.l.b16 %v68
    %v108 = vunpack.c.l.b16 %v69
    %v109 = vunpack.c.l.b16 %v70
    %v110 = vunpack.c.l.b16 %v71
    %v111 = vunpack.c.l.b16 %v72
    %v112 = vunpack.c.l.b16 %v73
    %v113 = vunpack.c.l.b16 %v74
    %v114 = vunpack.c.l.b16 %v75
    %v115 = vunpack.c.l.b16 %v76
    %v116 = vunpack.c.l.b16 %v77
    %v117 = vunpack.c.l.b16 %v78
    %v118 = vunpack.c.l.b16 %v79
    %v119 = vunpack.c.l.b16 %v80
    %v120 = vunpack.c.l.b16 %v81
    %v121 = vpack.c.b16 %v106, %v105
    %v122 = vpack.c.b16 %v108, %v107
    %v123 = vpack.c.b16 %v110, %v109
    %v124 = vpack.c.b16 %v112, %v111
    %v125 = vpack.c.b16 %v114, %v113
    %v126 = vpack.c.b16 %v116, %v115
    %v127 = vpack.c.b16 %v118, %v117
    %v128 = vpack.c.b16 %v120, %v119
    %137 = vmatprep.subr.bf16.mxu0 0
    %138 = vmatpush1.bf16.msra.mxu0 %v128
    %139 = vmatprep.subr.bf16.mxu0 0
    %140 = vmatpush1.bf16.msra.mxu0 %v127
    %141 = vmatprep.subr.bf16.mxu0 0
    %142 = vmatpush1.bf16.msra.mxu0 %v126
    %143 = vmatprep.subr.bf16.mxu0 0
    %144 = vmatpush1.bf16.msra.mxu0 %v125
    %145 = vmatprep.subr.bf16.mxu0 0
    %146 = vmatpush1.bf16.msra.mxu0 %v124
    %147 = vmatprep.subr.bf16.mxu0 0
    %148 = vmatpush1.bf16.msra.mxu0 %v123
    %149 = vmatprep.subr.bf16.mxu0 0
    %150 = vmatpush1.bf16.msra.mxu0 %v122
    %151 = vmatprep.subr.bf16.mxu0 0
    %152 = vmatpush1.bf16.msra.mxu0 %v121
    %153 = vmatprep.subr.bf16.mxu0 0
    %154 = vmatpush2.bf16.msra.mxu0 0
    %155 = vmatprep.subr.bf16.mxu0 0
    %156 = vmatpush2.bf16.msra.mxu0 0
    %157 = vmatprep.subr.bf16.mxu0 0
    %158 = vmatpush2.bf16.msra.mxu0 0
    %159 = vmatprep.subr.bf16.mxu0 0
    %160 = vmatpush2.bf16.msra.mxu0 0
    %161 = vmatprep.subr.bf16.mxu0 0
    %162 = vmatpush2.bf16.msra.mxu0 0
    %163 = vmatprep.subr.bf16.mxu0 0
    %164 = vmatpush2.bf16.msra.mxu0 0
    %165 = vmatprep.subr.bf16.mxu0 0
    %166 = vmatpush2.bf16.msra.mxu0 0
    %167 = vmatprep.subr.bf16.mxu0 0
    %168 = vmatpush2.bf16.msra.mxu0 0
    %169 = vmatprep.mubr.bf16.mxu0 0
    %170 = vmatmul.mubr.bf16.gmra.mxu0 %v65
    %v171 = vpop.f32.mrf.mxu0
    %v172 = vadd.f32 %v87, %v171
    %v173 = vpop.f32.mrf.mxu0
    %v174 = vpop.f32.mrf.mxu0
    %v175 = vadd.f32 %v87, %v174
    %v176 = vpop.f32.mrf.mxu0
    %177 = vdwg.mxu0
    %v178 = vtanh.pop %v172
    %v179 = vtanh.pop %v175
    %v180 = vpack.c.bf16 %v179, %v178
    %s181 = scalar_lea.vmem [#allocation5], 64
    %v182 = vld [vmem:[%s181] sm:$0xf]
    %v183 = vld [vmem:[%s181 + $0x4] sm:$0xf]
    %v184 = vld [vmem:[%s181 + $0x8] sm:$0xf]
    %v185 = vld [vmem:[%s181 + $0xc] sm:$0xf]
    %v186 = vld [vmem:[%s181 + $0x10] sm:$0xf]
    %v187 = vld [vmem:[%s181 + $0x14] sm:$0xf]
    %v188 = vld [vmem:[%s181 + $0x18] sm:$0xf]
    %v189 = vld [vmem:[%s181 + $0x1c] sm:$0xf]
    %v190 = vld [vmem:[%s181 + $0x20] sm:$0xf]
    %v191 = vld [vmem:[%s181 + $0x24] sm:$0xf]
    %v192 = vld [vmem:[%s181 + $0x28] sm:$0xf]
    %v193 = vld [vmem:[%s181 + $0x2c] sm:$0xf]
    %v194 = vld [vmem:[%s181 + $0x30] sm:$0xf]
    %v195 = vld [vmem:[%s181 + $0x34] sm:$0xf]
    %v196 = vld [vmem:[%s181 + $0x38] sm:$0xf]
    %v197 = vld [vmem:[%s181 + $0x3c] sm:$0xf]
    %s198 = scalar_lea.vmem %s2, 1
    %v199 = vld [vmem:[%s198] sm:$0x1]
    %v201 = vlaneseq
    %v202 = vshrl.u32 %v201, 7
    %v203 = vsub.s32 0, %v202
    %v204 = vrot.slane %v199, %v203
    %v222 = vunpack.c.l.b16 %v182
    %v223 = vunpack.c.l.b16 %v183
    %v224 = vunpack.c.l.b16 %v184
    %v225 = vunpack.c.l.b16 %v185
    %v226 = vunpack.c.l.b16 %v186
    %v227 = vunpack.c.l.b16 %v187
    %v228 = vunpack.c.l.b16 %v188
    %v229 = vunpack.c.l.b16 %v189
    %v230 = vunpack.c.l.b16 %v190
    %v231 = vunpack.c.l.b16 %v191
    %v232 = vunpack.c.l.b16 %v192
    %v233 = vunpack.c.l.b16 %v193
    %v234 = vunpack.c.l.b16 %v194
    %v235 = vunpack.c.l.b16 %v195
    %v236 = vunpack.c.l.b16 %v196
    %v237 = vunpack.c.l.b16 %v197
    %v238 = vpack.c.b16 %v223, %v222
    %v239 = vpack.c.b16 %v225, %v224
    %v240 = vpack.c.b16 %v227, %v226
    %v241 = vpack.c.b16 %v229, %v228
    %v242 = vpack.c.b16 %v231, %v230
    %v243 = vpack.c.b16 %v233, %v232
    %v244 = vpack.c.b16 %v235, %v234
    %v245 = vpack.c.b16 %v237, %v236
    %254 = vmatprep.subr.bf16.mxu0 0
    %255 = vmatpush1.bf16.msra.mxu0 %v245
    %256 = vmatprep.subr.bf16.mxu0 0
    %257 = vmatpush1.bf16.msra.mxu0 %v244
    %258 = vmatprep.subr.bf16.mxu0 0
    %259 = vmatpush1.bf16.msra.mxu0 %v243
    %260 = vmatprep.subr.bf16.mxu0 0
    %261 = vmatpush1.bf16.msra.mxu0 %v242
    %262 = vmatprep.subr.bf16.mxu0 0
    %263 = vmatpush1.bf16.msra.mxu0 %v241
    %264 = vmatprep.subr.bf16.mxu0 0
    %265 = vmatpush1.bf16.msra.mxu0 %v240
    %266 = vmatprep.subr.bf16.mxu0 0
    %267 = vmatpush1.bf16.msra.mxu0 %v239
    %268 = vmatprep.subr.bf16.mxu0 0
    %269 = vmatpush1.bf16.msra.mxu0 %v238
    %270 = vmatprep.subr.bf16.mxu0 0
    %271 = vmatpush2.bf16.msra.mxu0 0
    %272 = vmatprep.subr.bf16.mxu0 0
    %273 = vmatpush2.bf16.msra.mxu0 0
    %274 = vmatprep.subr.bf16.mxu0 0
    %275 = vmatpush2.bf16.msra.mxu0 0
    %276 = vmatprep.subr.bf16.mxu0 0
    %277 = vmatpush2.bf16.msra.mxu0 0
    %278 = vmatprep.subr.bf16.mxu0 0
    %279 = vmatpush2.bf16.msra.mxu0 0
    %280 = vmatprep.subr.bf16.mxu0 0
    %281 = vmatpush2.bf16.msra.mxu0 0
    %282 = vmatprep.subr.bf16.mxu0 0
    %283 = vmatpush2.bf16.msra.mxu0 0
    %284 = vmatprep.subr.bf16.mxu0 0
    %285 = vmatpush2.bf16.msra.mxu0 0
    %286 = vmatprep.mubr.bf16.mxu0 0
    %287 = vmatmul.mubr.bf16.gmra.mxu0 %v180
    %v288 = vpop.f32.mrf.mxu0
    %v289 = vadd.f32 %v204, %v288
    %v290 = vpop.f32.mrf.mxu0
    %v291 = vpop.f32.mrf.mxu0
    %v292 = vadd.f32 %v204, %v291
    %v293 = vpop.f32.mrf.mxu0
    %294 = vdwg.mxu0
    %v295 = vtanh.pop %v289
    %v296 = vtanh.pop %v292
    %v297 = vpack.c.bf16 %v296, %v295
    %s298 = scalar_lea.vmem [#allocation5], 128
    %v299 = vld [vmem:[%s298] sm:$0xf]
    %v300 = vld [vmem:[%s298 + $0x4] sm:$0xf]
    %v301 = vld [vmem:[%s298 + $0x8] sm:$0xf]
    %v302 = vld [vmem:[%s298 + $0xc] sm:$0xf]
    %v303 = vld [vmem:[%s298 + $0x10] sm:$0xf]
    %v304 = vld [vmem:[%s298 + $0x14] sm:$0xf]
    %v305 = vld [vmem:[%s298 + $0x18] sm:$0xf]
    %v306 = vld [vmem:[%s298 + $0x1c] sm:$0xf]
    %v307 = vld [vmem:[%s298 + $0x20] sm:$0xf]
    %v308 = vld [vmem:[%s298 + $0x24] sm:$0xf]
    %v309 = vld [vmem:[%s298 + $0x28] sm:$0xf]
    %v310 = vld [vmem:[%s298 + $0x2c] sm:$0xf]
    %v311 = vld [vmem:[%s298 + $0x30] sm:$0xf]
    %v312 = vld [vmem:[%s298 + $0x34] sm:$0xf]
    %v313 = vld [vmem:[%s298 + $0x38] sm:$0xf]
    %v314 = vld [vmem:[%s298 + $0x3c] sm:$0xf]
    %s315 = scalar_lea.vmem %s2, 2
    %v316 = vld [vmem:[%s315] sm:$0x1]
    %v318 = vlaneseq
    %v319 = vshrl.u32 %v318, 7
    %v320 = vsub.s32 0, %v319
    %v321 = vrot.slane %v316, %v320
    %v339 = vunpack.c.l.b16 %v299
    %v340 = vunpack.c.l.b16 %v300
    %v341 = vunpack.c.l.b16 %v301
    %v342 = vunpack.c.l.b16 %v302
    %v343 = vunpack.c.l.b16 %v303
    %v344 = vunpack.c.l.b16 %v304
    %v345 = vunpack.c.l.b16 %v305
    %v346 = vunpack.c.l.b16 %v306
    %v347 = vunpack.c.l.b16 %v307
    %v348 = vunpack.c.l.b16 %v308
    %v349 = vunpack.c.l.b16 %v309
    %v350 = vunpack.c.l.b16 %v310
    %v351 = vunpack.c.l.b16 %v311
    %v352 = vunpack.c.l.b16 %v312
    %v353 = vunpack.c.l.b16 %v313
    %v354 = vunpack.c.l.b16 %v314
    %v355 = vpack.c.b16 %v340, %v339
    %v356 = vpack.c.b16 %v342, %v341
    %v357 = vpack.c.b16 %v344, %v343
    %v358 = vpack.c.b16 %v346, %v345
    %v359 = vpack.c.b16 %v348, %v347
    %v360 = vpack.c.b16 %v350, %v349
    %v361 = vpack.c.b16 %v352, %v351
    %v362 = vpack.c.b16 %v354, %v353
    %371 = vmatprep.subr.bf16.mxu0 0
    %372 = vmatpush1.bf16.msra.mxu0 %v362
    %373 = vmatprep.subr.bf16.mxu0 0
    %374 = vmatpush1.bf16.msra.mxu0 %v361
    %375 = vmatprep.subr.bf16.mxu0 0
    %376 = vmatpush1.bf16.msra.mxu0 %v360
    %377 = vmatprep.subr.bf16.mxu0 0
    %378 = vmatpush1.bf16.msra.mxu0 %v359
    %379 = vmatprep.subr.bf16.mxu0 0
    %380 = vmatpush1.bf16.msra.mxu0 %v358
    %381 = vmatprep.subr.bf16.mxu0 0
    %382 = vmatpush1.bf16.msra.mxu0 %v357
    %383 = vmatprep.subr.bf16.mxu0 0
    %384 = vmatpush1.bf16.msra.mxu0 %v356
    %385 = vmatprep.subr.bf16.mxu0 0
    %386 = vmatpush1.bf16.msra.mxu0 %v355
    %387 = vmatprep.subr.bf16.mxu0 0
    %388 = vmatpush2.bf16.msra.mxu0 0
    %389 = vmatprep.subr.bf16.mxu0 0
    %390 = vmatpush2.bf16.msra.mxu0 0
    %391 = vmatprep.subr.bf16.mxu0 0
    %392 = vmatpush2.bf16.msra.mxu0 0
    %393 = vmatprep.subr.bf16.mxu0 0
    %394 = vmatpush2.bf16.msra.mxu0 0
    %395 = vmatprep.subr.bf16.mxu0 0
    %396 = vmatpush2.bf16.msra.mxu0 0
    %397 = vmatprep.subr.bf16.mxu0 0
    %398 = vmatpush2.bf16.msra.mxu0 0
    %399 = vmatprep.subr.bf16.mxu0 0
    %400 = vmatpush2.bf16.msra.mxu0 0
    %401 = vmatprep.subr.bf16.mxu0 0
    %402 = vmatpush2.bf16.msra.mxu0 0
    %403 = vmatprep.mubr.bf16.mxu0 0
    %404 = vmatmul.mubr.bf16.gmra.mxu0 %v297
    %v405 = vpop.f32.mrf.mxu0
    %v406 = vadd.f32 %v321, %v405
    %v407 = vpop.f32.mrf.mxu0
    %v408 = vpop.f32.mrf.mxu0
    %v409 = vadd.f32 %v321, %v408
    %v410 = vpop.f32.mrf.mxu0
    %411 = vdwg.mxu0
    %v412 = vtanh.pop %v406
    %v413 = vtanh.pop %v409
    %v414 = vpack.c.bf16 %v413, %v412
    %v415 = vld [vmem:[#allocation7] sm:$0xf]
    %v416 = vld [vmem:[#allocation7 + $0x4] sm:$0xf]
    %v417 = vld [vmem:[#allocation7 + $0x8] sm:$0xf]
    %v418 = vld [vmem:[#allocation7 + $0xc] sm:$0xf]
    %v419 = vld [vmem:[#allocation7 + $0x10] sm:$0xf]
    %v420 = vld [vmem:[#allocation7 + $0x14] sm:$0xf]
    %v421 = vld [vmem:[#allocation7 + $0x18] sm:$0xf]
    %v422 = vld [vmem:[#allocation7 + $0x1c] sm:$0xf]
    %v423 = vld [vmem:[#allocation7 + $0x20] sm:$0xf]
    %v424 = vld [vmem:[#allocation7 + $0x24] sm:$0xf]
    %v425 = vld [vmem:[#allocation7 + $0x28] sm:$0xf]
    %v426 = vld [vmem:[#allocation7 + $0x2c] sm:$0xf]
    %v427 = vld [vmem:[#allocation7 + $0x30] sm:$0xf]
    %v428 = vld [vmem:[#allocation7 + $0x34] sm:$0xf]
    %v429 = vld [vmem:[#allocation7 + $0x38] sm:$0xf]
    %v430 = vld [vmem:[#allocation7 + $0x3c] sm:$0xf]
    %v431 = vld [vmem:[%s4] sm:$0x1]
    %v433 = vlaneseq
    %v434 = vshrl.u32 %v433, 7
    %v435 = vsub.s32 0, %v434
    %v436 = vrot.slane %v431, %v435
    %v454 = vunpack.c.l.b16 %v415
    %v455 = vunpack.c.l.b16 %v416
    %v456 = vunpack.c.l.b16 %v417
    %v457 = vunpack.c.l.b16 %v418
    %v458 = vunpack.c.l.b16 %v419
    %v459 = vunpack.c.l.b16 %v420
    %v460 = vunpack.c.l.b16 %v421
    %v461 = vunpack.c.l.b16 %v422
    %v462 = vunpack.c.l.b16 %v423
    %v463 = vunpack.c.l.b16 %v424
    %v464 = vunpack.c.l.b16 %v425
    %v465 = vunpack.c.l.b16 %v426
    %v466 = vunpack.c.l.b16 %v427
    %v467 = vunpack.c.l.b16 %v428
    %v468 = vunpack.c.l.b16 %v429
    %v469 = vunpack.c.l.b16 %v430
    %v470 = vpack.c.b16 %v455, %v454
    %v471 = vpack.c.b16 %v457, %v456
    %v472 = vpack.c.b16 %v459, %v458
    %v473 = vpack.c.b16 %v461, %v460
    %v474 = vpack.c.b16 %v463, %v462
    %v475 = vpack.c.b16 %v465, %v464
    %v476 = vpack.c.b16 %v467, %v466
    %v477 = vpack.c.b16 %v469, %v468
    %486 = vmatprep.subr.bf16.mxu0 0
    %487 = vmatpush1.bf16.msra.mxu0 %v477
    %488 = vmatprep.subr.bf16.mxu0 0
    %489 = vmatpush1.bf16.msra.mxu0 %v476
    %490 = vmatprep.subr.bf16.mxu0 0
    %491 = vmatpush1.bf16.msra.mxu0 %v475
    %492 = vmatprep.subr.bf16.mxu0 0
    %493 = vmatpush1.bf16.msra.mxu0 %v474
    %494 = vmatprep.subr.bf16.mxu0 0
    %495 = vmatpush1.bf16.msra.mxu0 %v473
    %496 = vmatprep.subr.bf16.mxu0 0
    %497 = vmatpush1.bf16.msra.mxu0 %v472
    %498 = vmatprep.subr.bf16.mxu0 0
    %499 = vmatpush1.bf16.msra.mxu0 %v471
    %500 = vmatprep.subr.bf16.mxu0 0
    %501 = vmatpush1.bf16.msra.mxu0 %v470
    %502 = vmatprep.subr.bf16.mxu0 0
    %503 = vmatpush2.bf16.msra.mxu0 0
    %504 = vmatprep.subr.bf16.mxu0 0
    %505 = vmatpush2.bf16.msra.mxu0 0
    %506 = vmatprep.subr.bf16.mxu0 0
    %507 = vmatpush2.bf16.msra.mxu0 0
    %508 = vmatprep.subr.bf16.mxu0 0
    %509 = vmatpush2.bf16.msra.mxu0 0
    %510 = vmatprep.subr.bf16.mxu0 0
    %511 = vmatpush2.bf16.msra.mxu0 0
    %512 = vmatprep.subr.bf16.mxu0 0
    %513 = vmatpush2.bf16.msra.mxu0 0
    %514 = vmatprep.subr.bf16.mxu0 0
    %515 = vmatpush2.bf16.msra.mxu0 0
    %516 = vmatprep.subr.bf16.mxu0 0
    %517 = vmatpush2.bf16.msra.mxu0 0
    %518 = vmatprep.mubr.bf16.mxu0 0
    %519 = vmatmul.mubr.bf16.gmra.mxu0 %v414
    %v520 = vpop.f32.mrf.mxu0
    %v521 = vadd.f32 %v436, %v520
    %v522 = vpop.f32.mrf.mxu0
    %v523 = vpop.f32.mrf.mxu0
    %v524 = vadd.f32 %v436, %v523
    %v525 = vpop.f32.mrf.mxu0
    %526 = vdwg.mxu0
    %v527 = vmax.f32 %v521, 0.0
    %v528 = vmax.f32 %v524, 0.0
    %529 = vst [vmem:[#allocation8] sm:$0xff] %v527
    %530 = vst [vmem:[#allocation8 + $0x8] sm:$0xff] %v528
    // Predicated region
    $region34: #{tpu_custom_call.1} parent=1 // pred_check
      _
    $region35: #{tpu_custom_call.1} parent=1 // pred_check_branch
      %532 = sbr.rel (0) target = $region37
    $region36: #{tpu_custom_call.1} parent=1 // pred_region
      %s534 = ssub.s32 256, 256
      %535 = vsyncadd [#allocation4], %s534
      %s536 = sshll.u32 [#allocation8], 4
      %s537 = int_to_ptr.vmem [resolvable:$true] %s536
      %542 = dma.vmem_to_hbm [thread:$0]  %s537, 256, %s5, [#allocation4], 128, 128, 8
    $region37: #{tpu_custom_call.1} parent=1 // pred_fallthru
      _
    // Predicated region
    $region38: #{tpu_custom_call.1} parent=1 // pred_check
      _
    $region39: #{tpu_custom_call.1} parent=1 // pred_check_branch
      %544 = sbr.rel (0) target = $region41
    $region40: #{tpu_custom_call.1} parent=1 // pred_region
      %545 = dma.done [#allocation4], 256
    $region41: #{tpu_custom_call.1} parent=1 // pred_fallthru
      _
    %546 = vsyncpa [#allocation3], 1
    %547 = vsyncpa [#allocation6], 1
    %548 = vsyncpa [#allocation4], 1

</llo_original>
